<compile_context>
chip_gen: v7x
topology: tpu7x:2x2x1
jax: 0.10.0
libtpu: 0.0.40
codegen_flags: <defaults>
</compile_context>

<pallas_src>
import numpy as np
import jax
import jax.numpy as jnp
from jax import lax
from jax.experimental import pallas as pl
from jax.experimental.pallas import tpu as pltpu


# ----------------------------- fused Pallas kernel -----------------------------

def _make_fused_kernel(H, W, Cin, Cb, Ce, stride):
    """Whole ShuffleUnit forward for one batch element, (C, H*W) layout."""
    HW = H * W
    taps = [(dy, dx) for dy in (-1, 0, 1) for dx in (-1, 0, 1)]
    shifts = [(-(dy * W + dx)) % HW for dy, dx in taps]     # lane-roll amounts

    def nine_tap(v, m_ref):
        # sum_t roll(v, shift_t) * m_ref[t] : a 3x3 "conv" on the flattened
        # (C, HW) tile.  Shifts run on the XLU (free slot next to the VPU MACs);
        # zero padding at image borders is baked into the per-tap masks, so no
        # padded scratch, no border zeroing, no unaligned slices.
        acc = v * m_ref[4]                                   # centre tap (shift 0)
        for t, s in enumerate(shifts):
            if t == 4:
                continue
            acc = acc + pltpu.roll(v, s, axis=1) * m_ref[t]
        return acc

    if stride == 1:
        def kernel(x_ref, w1_ref, b1_ref, dwm_ref, b2_ref, w2_ref, b3_ref, o_ref):
            x = x_ref[0]                                             # (Cin, HW)
            # grouped 1x1 conv + BN + ReLU; channel shuffle folded into w1 rows.
            y1 = jnp.dot(w1_ref[...], x, preferred_element_type=jnp.float32)
            y1 = jnp.maximum(y1 + b1_ref[...], 0.0)                  # (Cb, HW)
            # depthwise 3x3 + BN (masks*weights pre-fused into dwm).
            y2 = nine_tap(y1, dwm_ref) + b2_ref[...]                 # (Cb, HW)
            # grouped 1x1 conv + BN + fused residual add + final ReLU.
            out = jnp.dot(w2_ref[...], y2, preferred_element_type=jnp.float32)
            o_ref[0] = jnp.maximum(out + b3_ref[...] + x, 0.0).astype(o_ref.dtype)
        return kernel

    def kernel(x_ref, w1_ref, b1_ref, dwm_ref, b2_ref, w2_ref, b3_ref,
               avgm_ref, s_ref, o_ref):
        x = x_ref[0]                                                 # (Cin, HW)
        y1 = jnp.dot(w1_ref[...], x, preferred_element_type=jnp.float32)
        y1 = jnp.maximum(y1 + b1_ref[...], 0.0)                      # (Cb, HW)
        dw = nine_tap(y1, dwm_ref)                                   # (Cb, HW)
        # stride-2 subsample = tiny 0/1 selection matmul on the (idle) MXU.
        y2 = jnp.dot(dw, s_ref[...], preferred_element_type=jnp.float32)
        y2 = y2 + b2_ref[...]                                        # (Cb, HoWo)
        out = jnp.dot(w2_ref[...], y2, preferred_element_type=jnp.float32)
        o_ref[0, 0:Ce, :] = jnp.maximum(out + b3_ref[...], 0.0).astype(o_ref.dtype)
        # residual branch: 3x3 avg-pool, stride 2, pad 1 (masks already carry /9),
        # written into the remaining channel rows (fused concat) + final ReLU.
        r = nine_tap(x, avgm_ref)                                    # (Cin, HW)
        r = jnp.dot(r, s_ref[...], preferred_element_type=jnp.float32)
        o_ref[0, Ce:Ce + Cin, :] = jnp.maximum(r, 0.0).astype(o_ref.dtype)
    return kernel


def shuffle_unit_pallas(x_nchw, prep, cfg):
    """Fused ShuffleUnit forward.  x_nchw: (N, Cin, H, W) float32, NCHW-native."""
    N, Cin, H, W = x_nchw.shape
    Cb, Ce, stride = cfg["bottleneck"], cfg["expand_out"], cfg["stride"]
    Cout = cfg["out_channels"]
    HW = H * W
    if stride == 2:
        assert H % 2 == 0 and W % 2 == 0
    Ho = H if stride == 1 else H // 2
    Wo = W if stride == 1 else W // 2

    x = x_nchw.reshape(N, Cin, HW)          # free metadata reshape, stays NCHW

    kernel = _make_fused_kernel(H, W, Cin, Cb, Ce, stride)
    rep2 = lambda n: (0, 0)
    rep3 = lambda n: (0, 0, 0)
    in_specs = [
        pl.BlockSpec((1, Cin, HW), lambda n: (n, 0, 0)),
        pl.BlockSpec((Cb, Cin), rep2),            # w1 (BN1 + shuffle folded)
        pl.BlockSpec((Cb, 1), rep2),              # b1
        pl.BlockSpec((9, Cb, HW), rep3),          # dwm: per-tap weight*mask
        pl.BlockSpec((Cb, 1), rep2),              # b2
        pl.BlockSpec((Ce, Cb), rep2),             # w2 (BN3 folded)
        pl.BlockSpec((Ce, 1), rep2),              # b3
    ]
    args = [x, prep["w1"], prep["b1"], prep["dwm"], prep["b2"],
            prep["w2"], prep["b3"]]
    if stride == 2:
        in_specs += [pl.BlockSpec((9, 1, HW), rep3),          # avg-pool masks (/9)
                     pl.BlockSpec((HW, Ho * Wo), rep2)]       # 0/1 subsample matrix
        args += [prep["avgm"], prep["S"]]

    out = pl.pallas_call(
        kernel,
        out_shape=jax.ShapeDtypeStruct((N, Cout, Ho * Wo), x.dtype),
        grid=(N,),
        in_specs=in_specs,
        out_specs=pl.BlockSpec((1, Cout, Ho * Wo), lambda n: (n, 0, 0)),
        compiler_params=pltpu.CompilerParams(
            dimension_semantics=("parallel",),     # N>=2 steps -> both v7x TCs busy
            vmem_limit_bytes=32 * 1024 * 1024,     # explicit, safe on v5e..v7x
        ),
    )(*args)
    return out.reshape(N, Cout, Ho, Wo)            # free metadata reshape (NCHW)


# ----------------------------- parameter prep (hoisted) -----------------------------

def _bn_fold(bn, eps=1e-5):
    scale = bn["gamma"] / jnp.sqrt(bn["var"] + eps)
    bias = bn["beta"] - bn["mean"] * scale
    return scale, bias


def _dense_1x1(w_oihw, groups):
    """Grouped 1x1 conv weight (Cout, Cin/g, 1, 1) -> block-diagonal (Cout, Cin)."""
    cout, cin_g = w_oihw.shape[0], w_oihw.shape[1]
    cout_g = cout // groups
    w = jnp.zeros((cout, cin_g * groups), w_oihw.dtype)
    for g in range(groups):
        blk = w_oihw[g * cout_g:(g + 1) * cout_g, :, 0, 0]      # (cout_g, cin_g)
        w = w.at[g * cout_g:(g + 1) * cout_g,
                 g * cin_g:(g + 1) * cin_g].set(blk)
    return w


def prepare_params(cfg, p, H, W):
    """One-time prep: BN folding, block-diag dense 1x1 weights, channel shuffle
    folded into w1 rows, per-tap (weight x border-mask) arrays for the depthwise
    3x3 and avg-pool, and the 0/1 stride-2 subsample matrix."""
    cb, ce = cfg["bottleneck"], cfg["expand_out"]
    HW = H * W
    s1, bias1 = _bn_fold(p["bn1"])
    s2, bias2 = _bn_fold(p["bn2"])
    s3, bias3 = _bn_fold(p["bn3"])

    w1 = _dense_1x1(p["w1"], cfg["first_groups"]) * s1[:, None]        # (Cb, Cin)
    b1 = bias1
    if cfg["grouped_conv"]:
        g = cfg["groups"]
        perm = np.arange(cb).reshape(g, cb // g).T.reshape(-1)         # channel shuffle
        w1 = w1[perm]
        b1 = b1[perm]
    wdw = p["wdw"][:, 0] * s2[:, None, None]                           # (Cb, 3, 3)
    w2 = _dense_1x1(p["w2"], cfg["groups"]) * s3[:, None]              # (Ce, Cb)

    # Per-tap zero-padding masks over the flattened H*W positions.
    hh, ww = np.meshgrid(np.arange(H), np.arange(W), indexing="ij")
    taps = [(dy, dx) for dy in (-1, 0, 1) for dx in (-1, 0, 1)]
    mask = np.stack([((hh + dy >= 0) & (hh + dy < H) &
                      (ww + dx >= 0) & (ww + dx < W)).astype(np.float32).reshape(HW)
                     for dy, dx in taps])                              # (9, HW)
    mask_j = jnp.asarray(mask)
    wdw9 = jnp.reshape(wdw, (cb, 9)).T                                 # (9, Cb)
    dwm = wdw9[:, :, None] * mask_j[:, None, :]                        # (9, Cb, HW)

    prep = dict(w1=w1, b1=b1.reshape(cb, 1), dwm=dwm,
                b2=bias2.reshape(cb, 1), w2=w2, b3=bias3.reshape(ce, 1))

    if cfg["stride"] == 2:
        Ho, Wo = H // 2, W // 2
        avgm = (mask_j / 9.0)[:, None, :]                              # (9, 1, HW)
        S = np.zeros((HW, Ho * Wo), np.float32)
        for ho in range(Ho):
            for wo in range(Wo):
                S[(2 * ho) * W + 2 * wo, ho * Wo + wo] = 1.0           # even rows/cols
        prep.update(avgm=avgm, S=jnp.asarray(S))
    return prep


def make_cfg(in_channels, out_channels, groups, grouped_conv):
    assert in_channels <= out_channels
    bottleneck = out_channels // 4
    if in_channels == out_channels:
        stride, expand_out = 1, out_channels
    else:
        stride, expand_out = 2, out_channels - in_channels
    return dict(in_channels=in_channels, out_channels=out_channels,
                groups=groups, grouped_conv=grouped_conv,
                bottleneck=bottleneck, stride=stride, expand_out=expand_out,
                first_groups=groups if grouped_conv else 1)


def make_params(cfg, key):
    ks = jax.random.split(key, 6)

    def bn(k, c):
        k1, k2, k3, k4 = jax.random.split(k, 4)
        return dict(gamma=1.0 + 0.1 * jax.random.normal(k1, (c,), jnp.float32),
                    beta=0.1 * jax.random.normal(k2, (c,), jnp.float32),
                    mean=0.1 * jax.random.normal(k3, (c,), jnp.float32),
                    var=0.5 + 0.1 * jnp.abs(jax.random.normal(k4, (c,), jnp.float32)))

    cb, ce = cfg["bottleneck"], cfg["expand_out"]
    return dict(
        w1=0.2 * jax.random.normal(
            ks[0], (cb, cfg["in_channels"] // cfg["first_groups"], 1, 1), jnp.float32),
        bn1=bn(ks[1], cb),
        wdw=0.2 * jax.random.normal(ks[2], (cb, 1, 3, 3), jnp.float32),
        bn2=bn(ks[3], cb),
        w2=0.2 * jax.random.normal(
            ks[4], (ce, cb // cfg["groups"], 1, 1), jnp.float32),
        bn3=bn(ks[5], ce),
    )


# ----------------------------- pure-JAX reference -----------------------------

def _bn_nchw(x, bn, eps=1e-5):
    scale = bn["gamma"] / jnp.sqrt(bn["var"] + eps)
    bias = bn["beta"] - bn["mean"] * scale
    return x * scale[None, :, None, None] + bias[None, :, None, None]


def shuffle_unit_reference(x, p, cfg):
    dn = ("NCHW", "OIHW", "NCHW")
    y = lax.conv_general_dilated(x, p["w1"], (1, 1), "VALID",
                                 feature_group_count=cfg["first_groups"],
                                 dimension_numbers=dn)
    y = jnp.maximum(_bn_nchw(y, p["bn1"]), 0.0)
    if cfg["grouped_conv"]:
        N, C, H, W = y.shape
        g = cfg["groups"]
        y = y.reshape(N, g, C // g, H, W).transpose(0, 2, 1, 3, 4).reshape(N, C, H, W)
    s = cfg["stride"]
    y = lax.conv_general_dilated(y, p["wdw"], (s, s), ((1, 1), (1, 1)),
                                 feature_group_count=cfg["bottleneck"],
                                 dimension_numbers=dn)
    y = _bn_nchw(y, p["bn2"])
    y = lax.conv_general_dilated(y, p["w2"], (1, 1), "VALID",
                                 feature_group_count=cfg["groups"],
                                 dimension_numbers=dn)
    y = _bn_nchw(y, p["bn3"])
    if cfg["in_channels"] == cfg["out_channels"]:
        y = y + x
    else:
        r = lax.reduce_window(x, 0.0, lax.add, (1, 1, 3, 3), (1, 1, 2, 2),
                              ((0, 0), (0, 0), (1, 1), (1, 1))) / 9.0
        y = jnp.concatenate([y, r], axis=1)
    return jnp.maximum(y, 0.0)


# ----------------------------- main -----------------------------

if __name__ == "__main__":
    key = jax.random.PRNGKey(0)
    k_a, k_b, kx_a, kx_b = jax.random.split(key, 4)

    # Case A: in_channels == out_channels -> stride-1 depthwise, fused residual add.
    cfg_a = make_cfg(32, 32, groups=4, grouped_conv=True)
    p_a = make_params(cfg_a, k_a)
    prep_a = prepare_params(cfg_a, p_a, 16, 16)      # hoisted one-time param prep
    x_a = jax.random.normal(kx_a, (2, 32, 16, 16), jnp.float32)
    fwd_a = jax.jit(lambda x, prep: shuffle_unit_pallas(x, prep, cfg_a))
    out_a = jax.block_until_ready(fwd_a(x_a, prep_a))
    ref_a = jax.block_until_ready(shuffle_unit_reference(x_a, p_a, cfg_a))
    assert out_a.shape == (2, 32, 16, 16)
    assert float(jnp.max(jnp.abs(out_a - ref_a))) < 1e-2

    # Case B: in_channels < out_channels -> stride-2 depthwise,
    #         avg-pool residual + in-kernel channel concat.
    cfg_b = make_cfg(16, 32, groups=4, grouped_conv=False)
    p_b = make_params(cfg_b, k_b)
    prep_b = prepare_params(cfg_b, p_b, 16, 16)
    x_b = jax.random.normal(kx_b, (2, 16, 16, 16), jnp.float32)
    fwd_b = jax.jit(lambda x, prep: shuffle_unit_pallas(x, prep, cfg_b))
    out_b = jax.block_until_ready(fwd_b(x_b, prep_b))
    ref_b = jax.block_until_ready(shuffle_unit_reference(x_b, p_b, cfg_b))
    assert out_b.shape == (2, 32, 8, 8)
    assert float(jnp.max(jnp.abs(out_b - ref_b))) < 1e-2

    print("KERNEL_OK")
</pallas_src>

<mosaic_0001>
module attributes {stable_mosaic.version = 11 : i64} {
  func.func @kernel(%arg0: i32, %arg1: memref<1x32x256xf32, #tpu.memory_space<vmem>>, %arg2: memref<8x32xf32, #tpu.memory_space<vmem>>, %arg3: memref<8x1xf32, #tpu.memory_space<vmem>>, %arg4: memref<9x8x256xf32, #tpu.memory_space<vmem>>, %arg5: memref<8x1xf32, #tpu.memory_space<vmem>>, %arg6: memref<32x8xf32, #tpu.memory_space<vmem>>, %arg7: memref<32x1xf32, #tpu.memory_space<vmem>>, %arg8: memref<1x32x256xf32, #tpu.memory_space<vmem>>) attributes {dimension_semantics = [#tpu.dimension_semantics<parallel>], iteration_bounds = array<i64: 2>, scalar_prefetch = 0 : i64, scratch_operands = 0 : i64, tpu.core_type = #tpu.core_type<tc>, window_params = [{transform_indices = @transform_0, window_bounds = array<i64: 1, 32, 256>}, {pipeline_mode = #tpu.pipeline_mode<synchronous>, transform_indices = @transform_1, window_bounds = array<i64: 8, 32>}, {pipeline_mode = #tpu.pipeline_mode<synchronous>, transform_indices = @transform_2, window_bounds = array<i64: 8, 1>}, {pipeline_mode = #tpu.pipeline_mode<synchronous>, transform_indices = @transform_3, window_bounds = array<i64: 9, 8, 256>}, {pipeline_mode = #tpu.pipeline_mode<synchronous>, transform_indices = @transform_4, window_bounds = array<i64: 8, 1>}, {pipeline_mode = #tpu.pipeline_mode<synchronous>, transform_indices = @transform_5, window_bounds = array<i64: 32, 8>}, {pipeline_mode = #tpu.pipeline_mode<synchronous>, transform_indices = @transform_6, window_bounds = array<i64: 32, 1>}, {transform_indices = @transform_7, window_bounds = array<i64: 1, 32, 256>}]} {
    %c0 = arith.constant 0 : index
    %c0_0 = arith.constant 0 : index
    %c0_1 = arith.constant 0 : index
    %0 = vector.load %arg1[%c0, %c0_0, %c0_1] : memref<1x32x256xf32, #tpu.memory_space<vmem>>, vector<1x32x256xf32>
    %1 = vector.shape_cast %0 : vector<1x32x256xf32> to vector<32x256xf32>
    %c0_2 = arith.constant 0 : index
    %c0_3 = arith.constant 0 : index
    %2 = vector.load %arg2[%c0_2, %c0_3] : memref<8x32xf32, #tpu.memory_space<vmem>>, vector<8x32xf32>
    %cst = arith.constant dense<0.000000e+00> : vector<8x256xf32>
    %3 = tpu.matmul %2, %1, %cst {dimension_numbers = #tpu.dot_dimension_numbers<[1], [0], [0], [1], [0, 0, 1, 1], [], []>} : vector<8x32xf32>, vector<32x256xf32>, vector<8x256xf32> -> vector<8x256xf32>
    %c0_4 = arith.constant 0 : index
    %c0_5 = arith.constant 0 : index
    %4 = vector.load %arg3[%c0_4, %c0_5] : memref<8x1xf32, #tpu.memory_space<vmem>>, vector<8x1xf32>
    %5 = vector.broadcast %4 : vector<8x1xf32> to vector<8x256xf32>
    %6 = arith.addf %3, %5 : vector<8x256xf32>
    %cst_6 = arith.constant 0.000000e+00 : f32
    %7 = vector.broadcast %cst_6 : f32 to vector<8x256xf32>
    %8 = arith.maximumf %6, %7 : vector<8x256xf32>
    %c4 = arith.constant 4 : index
    %c0_7 = arith.constant 0 : index
    %c0_8 = arith.constant 0 : index
    %9 = vector.load %arg4[%c4, %c0_7, %c0_8] : memref<9x8x256xf32, #tpu.memory_space<vmem>>, vector<1x8x256xf32>
    %10 = vector.shape_cast %9 : vector<1x8x256xf32> to vector<8x256xf32>
    %11 = arith.mulf %8, %10 : vector<8x256xf32>
    %c17_i32 = arith.constant 17 : i32
    %12 = tpu.dynamic_rotate %8 by %c17_i32 dim 1 : vector<8x256xf32>, i32 -> vector<8x256xf32>
    %c0_9 = arith.constant 0 : index
    %c0_10 = arith.constant 0 : index
    %c0_11 = arith.constant 0 : index
    %13 = vector.load %arg4[%c0_9, %c0_10, %c0_11] : memref<9x8x256xf32, #tpu.memory_space<vmem>>, vector<1x8x256xf32>
    %14 = vector.shape_cast %13 : vector<1x8x256xf32> to vector<8x256xf32>
    %15 = arith.mulf %12, %14 : vector<8x256xf32>
    %16 = arith.addf %11, %15 : vector<8x256xf32>
    %c16_i32 = arith.constant 16 : i32
    %17 = tpu.dynamic_rotate %8 by %c16_i32 dim 1 : vector<8x256xf32>, i32 -> vector<8x256xf32>
    %c1 = arith.constant 1 : index
    %c0_12 = arith.constant 0 : index
    %c0_13 = arith.constant 0 : index
    %18 = vector.load %arg4[%c1, %c0_12, %c0_13] : memref<9x8x256xf32, #tpu.memory_space<vmem>>, vector<1x8x256xf32>
    %19 = vector.shape_cast %18 : vector<1x8x256xf32> to vector<8x256xf32>
    %20 = arith.mulf %17, %19 : vector<8x256xf32>
    %21 = arith.addf %16, %20 : vector<8x256xf32>
    %c15_i32 = arith.constant 15 : i32
    %22 = tpu.dynamic_rotate %8 by %c15_i32 dim 1 : vector<8x256xf32>, i32 -> vector<8x256xf32>
    %c2 = arith.constant 2 : index
    %c0_14 = arith.constant 0 : index
    %c0_15 = arith.constant 0 : index
    %23 = vector.load %arg4[%c2, %c0_14, %c0_15] : memref<9x8x256xf32, #tpu.memory_space<vmem>>, vector<1x8x256xf32>
    %24 = vector.shape_cast %23 : vector<1x8x256xf32> to vector<8x256xf32>
    %25 = arith.mulf %22, %24 : vector<8x256xf32>
    %26 = arith.addf %21, %25 : vector<8x256xf32>
    %c1_i32 = arith.constant 1 : i32
    %27 = tpu.dynamic_rotate %8 by %c1_i32 dim 1 : vector<8x256xf32>, i32 -> vector<8x256xf32>
    %c3 = arith.constant 3 : index
    %c0_16 = arith.constant 0 : index
    %c0_17 = arith.constant 0 : index
    %28 = vector.load %arg4[%c3, %c0_16, %c0_17] : memref<9x8x256xf32, #tpu.memory_space<vmem>>, vector<1x8x256xf32>
    %29 = vector.shape_cast %28 : vector<1x8x256xf32> to vector<8x256xf32>
    %30 = arith.mulf %27, %29 : vector<8x256xf32>
    %31 = arith.addf %26, %30 : vector<8x256xf32>
    %c255_i32 = arith.constant 255 : i32
    %32 = tpu.dynamic_rotate %8 by %c255_i32 dim 1 : vector<8x256xf32>, i32 -> vector<8x256xf32>
    %c5 = arith.constant 5 : index
    %c0_18 = arith.constant 0 : index
    %c0_19 = arith.constant 0 : index
    %33 = vector.load %arg4[%c5, %c0_18, %c0_19] : memref<9x8x256xf32, #tpu.memory_space<vmem>>, vector<1x8x256xf32>
    %34 = vector.shape_cast %33 : vector<1x8x256xf32> to vector<8x256xf32>
    %35 = arith.mulf %32, %34 : vector<8x256xf32>
    %36 = arith.addf %31, %35 : vector<8x256xf32>
    %c241_i32 = arith.constant 241 : i32
    %37 = tpu.dynamic_rotate %8 by %c241_i32 dim 1 : vector<8x256xf32>, i32 -> vector<8x256xf32>
    %c6 = arith.constant 6 : index
    %c0_20 = arith.constant 0 : index
    %c0_21 = arith.constant 0 : index
    %38 = vector.load %arg4[%c6, %c0_20, %c0_21] : memref<9x8x256xf32, #tpu.memory_space<vmem>>, vector<1x8x256xf32>
    %39 = vector.shape_cast %38 : vector<1x8x256xf32> to vector<8x256xf32>
    %40 = arith.mulf %37, %39 : vector<8x256xf32>
    %41 = arith.addf %36, %40 : vector<8x256xf32>
    %c240_i32 = arith.constant 240 : i32
    %42 = tpu.dynamic_rotate %8 by %c240_i32 dim 1 : vector<8x256xf32>, i32 -> vector<8x256xf32>
    %c7 = arith.constant 7 : index
    %c0_22 = arith.constant 0 : index
    %c0_23 = arith.constant 0 : index
    %43 = vector.load %arg4[%c7, %c0_22, %c0_23] : memref<9x8x256xf32, #tpu.memory_space<vmem>>, vector<1x8x256xf32>
    %44 = vector.shape_cast %43 : vector<1x8x256xf32> to vector<8x256xf32>
    %45 = arith.mulf %42, %44 : vector<8x256xf32>
    %46 = arith.addf %41, %45 : vector<8x256xf32>
    %c239_i32 = arith.constant 239 : i32
    %47 = tpu.dynamic_rotate %8 by %c239_i32 dim 1 : vector<8x256xf32>, i32 -> vector<8x256xf32>
    %c8 = arith.constant 8 : index
    %c0_24 = arith.constant 0 : index
    %c0_25 = arith.constant 0 : index
    %48 = vector.load %arg4[%c8, %c0_24, %c0_25] : memref<9x8x256xf32, #tpu.memory_space<vmem>>, vector<1x8x256xf32>
    %49 = vector.shape_cast %48 : vector<1x8x256xf32> to vector<8x256xf32>
    %50 = arith.mulf %47, %49 : vector<8x256xf32>
    %51 = arith.addf %46, %50 : vector<8x256xf32>
    %c0_26 = arith.constant 0 : index
    %c0_27 = arith.constant 0 : index
    %52 = vector.load %arg5[%c0_26, %c0_27] : memref<8x1xf32, #tpu.memory_space<vmem>>, vector<8x1xf32>
    %53 = vector.broadcast %52 : vector<8x1xf32> to vector<8x256xf32>
    %54 = arith.addf %51, %53 : vector<8x256xf32>
    %c0_28 = arith.constant 0 : index
    %c0_29 = arith.constant 0 : index
    %55 = vector.load %arg6[%c0_28, %c0_29] : memref<32x8xf32, #tpu.memory_space<vmem>>, vector<32x8xf32>
    %cst_30 = arith.constant dense<0.000000e+00> : vector<32x256xf32>
    %56 = tpu.matmul %55, %54, %cst_30 {dimension_numbers = #tpu.dot_dimension_numbers<[1], [0], [0], [1], [0, 0, 1, 1], [], []>} : vector<32x8xf32>, vector<8x256xf32>, vector<32x256xf32> -> vector<32x256xf32>
    %c0_31 = arith.constant 0 : index
    %c0_32 = arith.constant 0 : index
    %57 = vector.load %arg7[%c0_31, %c0_32] : memref<32x1xf32, #tpu.memory_space<vmem>>, vector<32x1xf32>
    %58 = vector.broadcast %57 : vector<32x1xf32> to vector<32x256xf32>
    %59 = arith.addf %56, %58 : vector<32x256xf32>
    %60 = arith.addf %59, %1 : vector<32x256xf32>
    %cst_33 = arith.constant 0.000000e+00 : f32
    %61 = vector.broadcast %cst_33 : f32 to vector<32x256xf32>
    %62 = arith.maximumf %60, %61 : vector<32x256xf32>
    %c0_34 = arith.constant 0 : index
    %c0_35 = arith.constant 0 : index
    %c0_36 = arith.constant 0 : index
    %63 = vector.load %arg8[%c0_34, %c0_35, %c0_36] : memref<1x32x256xf32, #tpu.memory_space<vmem>>, vector<1x32x256xf32>
    %64 = vector.shape_cast %63 : vector<1x32x256xf32> to vector<32x256xf32>
    %65 = vector.shape_cast %62 : vector<32x256xf32> to vector<1x32x256xf32>
    tpu.vector_store %arg8[%c0_34, %c0_35, %c0_36], %65 {strides = array<i32>} : memref<1x32x256xf32, #tpu.memory_space<vmem>>, vector<1x32x256xf32>,
    return
  }
  func.func @transform_0(%arg0: i32) -> (i32, i32, i32) {
    %c0_i32 = arith.constant 0 : i32
    %c0_i32_0 = arith.constant 0 : i32
    %c0_i32_1 = arith.constant 0 : i32
    return %arg0, %c0_i32, %c0_i32_0 : i32, i32, i32
  }
  func.func @transform_1(%arg0: i32) -> (i32, i32) {
    %c0_i32 = arith.constant 0 : i32
    %c0_i32_0 = arith.constant 0 : i32
    %c0_i32_1 = arith.constant 0 : i32
    return %c0_i32, %c0_i32_0 : i32, i32
  }
  func.func @transform_2(%arg0: i32) -> (i32, i32) {
    %c0_i32 = arith.constant 0 : i32
    %c0_i32_0 = arith.constant 0 : i32
    %c0_i32_1 = arith.constant 0 : i32
    return %c0_i32, %c0_i32_0 : i32, i32
  }
  func.func @transform_3(%arg0: i32) -> (i32, i32, i32) {
    %c0_i32 = arith.constant 0 : i32
    %c0_i32_0 = arith.constant 0 : i32
    %c0_i32_1 = arith.constant 0 : i32
    %c0_i32_2 = arith.constant 0 : i32
    return %c0_i32, %c0_i32_0, %c0_i32_1 : i32, i32, i32
  }
  func.func @transform_4(%arg0: i32) -> (i32, i32) {
    %c0_i32 = arith.constant 0 : i32
    %c0_i32_0 = arith.constant 0 : i32
    %c0_i32_1 = arith.constant 0 : i32
    return %c0_i32, %c0_i32_0 : i32, i32
  }
  func.func @transform_5(%arg0: i32) -> (i32, i32) {
    %c0_i32 = arith.constant 0 : i32
    %c0_i32_0 = arith.constant 0 : i32
    %c0_i32_1 = arith.constant 0 : i32
    return %c0_i32, %c0_i32_0 : i32, i32
  }
  func.func @transform_6(%arg0: i32) -> (i32, i32) {
    %c0_i32 = arith.constant 0 : i32
    %c0_i32_0 = arith.constant 0 : i32
    %c0_i32_1 = arith.constant 0 : i32
    return %c0_i32, %c0_i32_0 : i32, i32
  }
  func.func @transform_7(%arg0: i32) -> (i32, i32, i32) {
    %c0_i32 = arith.constant 0 : i32
    %c0_i32_0 = arith.constant 0 : i32
    %c0_i32_1 = arith.constant 0 : i32
    return %arg0, %c0_i32, %c0_i32_0 : i32, i32, i32
  }
}

</mosaic_0001>

<llo_original>
// kernel: _lambda_.1
$region0: #{_lambda_.1}
  #allocation0 [shape = 'u32[]', space=smem, size = 0x4, offset = 0x4, fixed_abs, tag = 'smem constant byte address 0x4 - core index']
  #allocation1 [shape = 'u32[144,128]{1,0:T(1,128)}', space=vmem, size = 0x12000, scoped, tag = 'internal scratch']
  %s0 = inlined_call_operand.vmem [shape: f32[2,32,256], index: 0, kind: input, shape index: {}]
  %s1 = inlined_call_operand.vmem [shape: f32[8,32], index: 1, kind: input, shape index: {}]
  %s2 = inlined_call_operand.vmem [shape: f32[8,1], index: 2, kind: input, shape index: {}]
  %s3 = inlined_call_operand.vmem [shape: f32[9,8,256], index: 3, kind: input, shape index: {}]
  %s4 = inlined_call_operand.vmem [shape: f32[8,1], index: 4, kind: input, shape index: {}]
  %s5 = inlined_call_operand.vmem [shape: f32[32,8], index: 5, kind: input, shape index: {}]
  %s6 = inlined_call_operand.vmem [shape: f32[32,1], index: 6, kind: input, shape index: {}]
  %s7 = inlined_call_operand.vmem [shape: f32[2,32,256], index: 7, kind: output, shape index: {}]
  %s8 = sld [smem:[#allocation0]]
  $region61: #{_lambda_.1} parent=0
    _
  %s10 = ssub.s32 1, %s8
  %s11 = scalar_select 0, %s10, %s8
  loop: start=0, step=1, limit=4
  $region2: #{_lambda_.1} parent=0 // loop_pre_header
    _
  $region3: #{_lambda_.1} parent=0 // loop_header
    %s13 = sphi 0, %s17
    %p14 = scmp.ge.s32.totalorder %s13, 4
    %s23 = sphi 0, %s25
    %s26 = sphi 0, %s23
    %s27 = sphi 0, %s26
    %s43 = sphi 0, %s27
    %s47 = sphi 0, %s47
    %s49 = sphi 0, %s47
    %s50 = sphi 0, %s49
    %s64 = sphi 0, %s50
    %s68 = sphi 0, %s68
    %s70 = sphi 0, %s68
    %s71 = sphi 0, %s70
    %s85 = sphi 0, %s71
    %s89 = sphi 0, %s89
    %s91 = sphi 0, %s89
    %s92 = sphi 0, %s91
    %s106 = sphi 0, %s92
    %s110 = sphi 0, %s110
    %s112 = sphi 0, %s110
    %s113 = sphi 0, %s112
    %s127 = sphi 0, %s113
    %s131 = sphi 0, %s131
    %s133 = sphi 0, %s131
    %s134 = sphi 0, %s133
    %s148 = sphi 0, %s134
    %s152 = sphi 0, %s152
    %s154 = sphi 0, %s152
    %s155 = sphi 0, %s154
    %s169 = sphi 0, %s155
    %s175 = sphi 0, %s177
    %s178 = sphi 0, %s175
    %s179 = sphi 0, %s178
    %s195 = sphi 0, %s179
  $region4: #{_lambda_.1} parent=0 // loop_header_branch
    %16 = sbr.rel (%p14) target = $region8
  $region5: #{_lambda_.1} parent=0 // loop_body
    %s18 = ssub.s32 %s13, 1
    %s19 = ssub.s32 %s13, 2
    %s20 = sadd.s32 %s13, 1
    %s21 = ssub.s32 %s13, %s20
    %p22 = scmp.eq.s32.totalorder %s21, 0
    %s24 = sadd.s32 %s23, 1
    %s25 = scalar_select %p22, %s23, %s24
    %p28 = pneg %p22
    %p29 = scmp.eq.s32.totalorder %s13, 1
    %p30 = por %p28, %p29
    %p31 = scmp.ne.s32.totalorder %s23, %s26
    %p32 = scmp.eq.s32.totalorder %s13, 0
    %p33 = por %p31, %p32
    %p34 = scmp.ne.s32.totalorder %s23, %s26
    %p35 = scmp.eq.s32.totalorder %s18, 1
    %p36 = por %p34, %p35
    %p37 = scmp.ne.s32.totalorder %s26, %s27
    %p38 = scmp.eq.s32.totalorder %s18, 0
    %p39 = por %p37, %p38
    %p40 = scmp.ne.s32.totalorder %s26, %s27
    %p41 = scmp.eq.s32.totalorder %s19, 1
    %p42 = por %p40, %p41
    %p44 = scmp.ne.s32.totalorder %s27, %s43
    %p45 = scmp.eq.s32.totalorder %s19, 0
    %p46 = por %p44, %p45
    %s48 = sadd.s32 %s47, 1
    %p51 = scmp.eq.s32.totalorder %s13, 1
    %p52 = scmp.ne.s32.totalorder %s47, %s49
    %p53 = scmp.eq.s32.totalorder %s13, 0
    %p54 = por %p52, %p53
    %p55 = scmp.ne.s32.totalorder %s47, %s49
    %p56 = scmp.eq.s32.totalorder %s18, 1
    %p57 = por %p55, %p56
    %p58 = scmp.ne.s32.totalorder %s49, %s50
    %p59 = scmp.eq.s32.totalorder %s18, 0
    %p60 = por %p58, %p59
    %p61 = scmp.ne.s32.totalorder %s49, %s50
    %p62 = scmp.eq.s32.totalorder %s19, 1
    %p63 = por %p61, %p62
    %p65 = scmp.ne.s32.totalorder %s50, %s64
    %p66 = scmp.eq.s32.totalorder %s19, 0
    %p67 = por %p65, %p66
    %s69 = sadd.s32 %s68, 1
    %p72 = scmp.eq.s32.totalorder %s13, 1
    %p73 = scmp.ne.s32.totalorder %s68, %s70
    %p74 = scmp.eq.s32.totalorder %s13, 0
    %p75 = por %p73, %p74
    %p76 = scmp.ne.s32.totalorder %s68, %s70
    %p77 = scmp.eq.s32.totalorder %s18, 1
    %p78 = por %p76, %p77
    %p79 = scmp.ne.s32.totalorder %s70, %s71
    %p80 = scmp.eq.s32.totalorder %s18, 0
    %p81 = por %p79, %p80
    %p82 = scmp.ne.s32.totalorder %s70, %s71
    %p83 = scmp.eq.s32.totalorder %s19, 1
    %p84 = por %p82, %p83
    %p86 = scmp.ne.s32.totalorder %s71, %s85
    %p87 = scmp.eq.s32.totalorder %s19, 0
    %p88 = por %p86, %p87
    %s90 = sadd.s32 %s89, 1
    %p93 = scmp.eq.s32.totalorder %s13, 1
    %p94 = scmp.ne.s32.totalorder %s89, %s91
    %p95 = scmp.eq.s32.totalorder %s13, 0
    %p96 = por %p94, %p95
    %p97 = scmp.ne.s32.totalorder %s89, %s91
    %p98 = scmp.eq.s32.totalorder %s18, 1
    %p99 = por %p97, %p98
    %p100 = scmp.ne.s32.totalorder %s91, %s92
    %p101 = scmp.eq.s32.totalorder %s18, 0
    %p102 = por %p100, %p101
    %p103 = scmp.ne.s32.totalorder %s91, %s92
    %p104 = scmp.eq.s32.totalorder %s19, 1
    %p105 = por %p103, %p104
    %p107 = scmp.ne.s32.totalorder %s92, %s106
    %p108 = scmp.eq.s32.totalorder %s19, 0
    %p109 = por %p107, %p108
    %s111 = sadd.s32 %s110, 1
    %p114 = scmp.eq.s32.totalorder %s13, 1
    %p115 = scmp.ne.s32.totalorder %s110, %s112
    %p116 = scmp.eq.s32.totalorder %s13, 0
    %p117 = por %p115, %p116
    %p118 = scmp.ne.s32.totalorder %s110, %s112
    %p119 = scmp.eq.s32.totalorder %s18, 1
    %p120 = por %p118, %p119
    %p121 = scmp.ne.s32.totalorder %s112, %s113
    %p122 = scmp.eq.s32.totalorder %s18, 0
    %p123 = por %p121, %p122
    %p124 = scmp.ne.s32.totalorder %s112, %s113
    %p125 = scmp.eq.s32.totalorder %s19, 1
    %p126 = por %p124, %p125
    %p128 = scmp.ne.s32.totalorder %s113, %s127
    %p129 = scmp.eq.s32.totalorder %s19, 0
    %p130 = por %p128, %p129
    %s132 = sadd.s32 %s131, 1
    %p135 = scmp.eq.s32.totalorder %s13, 1
    %p136 = scmp.ne.s32.totalorder %s131, %s133
    %p137 = scmp.eq.s32.totalorder %s13, 0
    %p138 = por %p136, %p137
    %p139 = scmp.ne.s32.totalorder %s131, %s133
    %p140 = scmp.eq.s32.totalorder %s18, 1
    %p141 = por %p139, %p140
    %p142 = scmp.ne.s32.totalorder %s133, %s134
    %p143 = scmp.eq.s32.totalorder %s18, 0
    %p144 = por %p142, %p143
    %p145 = scmp.ne.s32.totalorder %s133, %s134
    %p146 = scmp.eq.s32.totalorder %s19, 1
    %p147 = por %p145, %p146
    %p149 = scmp.ne.s32.totalorder %s134, %s148
    %p150 = scmp.eq.s32.totalorder %s19, 0
    %p151 = por %p149, %p150
    %s153 = sadd.s32 %s152, 1
    %p156 = scmp.eq.s32.totalorder %s13, 1
    %p157 = scmp.ne.s32.totalorder %s152, %s154
    %p158 = scmp.eq.s32.totalorder %s13, 0
    %p159 = por %p157, %p158
    %p160 = scmp.ne.s32.totalorder %s152, %s154
    %p161 = scmp.eq.s32.totalorder %s18, 1
    %p162 = por %p160, %p161
    %p163 = scmp.ne.s32.totalorder %s154, %s155
    %p164 = scmp.eq.s32.totalorder %s18, 0
    %p165 = por %p163, %p164
    %p166 = scmp.ne.s32.totalorder %s154, %s155
    %p167 = scmp.eq.s32.totalorder %s19, 1
    %p168 = por %p166, %p167
    %p170 = scmp.ne.s32.totalorder %s155, %s169
    %p171 = scmp.eq.s32.totalorder %s19, 0
    %p172 = por %p170, %p171
    %s173 = ssub.s32 %s13, %s20
    %p174 = scmp.eq.s32.totalorder %s173, 0
    %s176 = sadd.s32 %s175, 1
    %s177 = scalar_select %p174, %s175, %s176
    %p180 = pneg %p174
    %p181 = scmp.eq.s32.totalorder %s13, 1
    %p182 = por %p180, %p181
    %p183 = scmp.ne.s32.totalorder %s175, %s178
    %p184 = scmp.eq.s32.totalorder %s13, 0
    %p185 = por %p183, %p184
    %p186 = scmp.ne.s32.totalorder %s175, %s178
    %p187 = scmp.eq.s32.totalorder %s18, 1
    %p188 = por %p186, %p187
    %p189 = scmp.ne.s32.totalorder %s178, %s179
    %p190 = scmp.eq.s32.totalorder %s18, 0
    %p191 = por %p189, %p190
    %p192 = scmp.ne.s32.totalorder %s178, %s179
    %p193 = scmp.eq.s32.totalorder %s19, 1
    %p194 = por %p192, %p193
    %p196 = scmp.ne.s32.totalorder %s179, %s195
    %p197 = scmp.eq.s32.totalorder %s19, 0
    %p198 = por %p196, %p197
    %p199 = scmp.le.s32.totalorder 1, %s13
    %p200 = scmp.lt.s32.totalorder %s13, 3
    %p201 = pnand %p199, %p200
    %p202 = pneg %p201
    // Predicated region
    $region9: #{_lambda_.1} parent=5 // pred_check
      _
    $region10: #{_lambda_.1} parent=5 // pred_check_branch
      %204 = sbr.rel (%p201) target = $region12
    $region11: #{_lambda_.1} parent=5 // pred_region
      %s205 = ssub.s32 %s13, 1
      // Predicated region
      $region13: #{_lambda_.1} parent=11 // pred_check
        %p206 = pneg %p60
      $region14: #{_lambda_.1} parent=11 // pred_check_branch
        %208 = sbr.rel (%p206) target = $region16
      $region15: #{_lambda_.1} parent=11 // pred_region
        _
      $region16: #{_lambda_.1} parent=11 // pred_fallthru
        _
      // Predicated region
      $region17: #{_lambda_.1} parent=11 // pred_check
        %p209 = pneg %p81
      $region18: #{_lambda_.1} parent=11 // pred_check_branch
        %211 = sbr.rel (%p209) target = $region20
      $region19: #{_lambda_.1} parent=11 // pred_region
        _
      $region20: #{_lambda_.1} parent=11 // pred_fallthru
        _
      // Predicated region
      $region21: #{_lambda_.1} parent=11 // pred_check
        %p212 = pneg %p102
      $region22: #{_lambda_.1} parent=11 // pred_check_branch
        %214 = sbr.rel (%p212) target = $region24
      $region23: #{_lambda_.1} parent=11 // pred_region
        _
      $region24: #{_lambda_.1} parent=11 // pred_fallthru
        _
      // Predicated region
      $region25: #{_lambda_.1} parent=11 // pred_check
        %p215 = pneg %p123
      $region26: #{_lambda_.1} parent=11 // pred_check_branch
        %217 = sbr.rel (%p215) target = $region28
      $region27: #{_lambda_.1} parent=11 // pred_region
        _
      $region28: #{_lambda_.1} parent=11 // pred_fallthru
        _
      // Predicated region
      $region29: #{_lambda_.1} parent=11 // pred_check
        %p218 = pneg %p144
      $region30: #{_lambda_.1} parent=11 // pred_check_branch
        %220 = sbr.rel (%p218) target = $region32
      $region31: #{_lambda_.1} parent=11 // pred_region
        _
      $region32: #{_lambda_.1} parent=11 // pred_fallthru
        _
      // Predicated region
      $region33: #{_lambda_.1} parent=11 // pred_check
        %p221 = pneg %p165
      $region34: #{_lambda_.1} parent=11 // pred_check_branch
        %223 = sbr.rel (%p221) target = $region36
      $region35: #{_lambda_.1} parent=11 // pred_region
        _
      $region36: #{_lambda_.1} parent=11 // pred_fallthru
        _
    $region12: #{_lambda_.1} parent=5 // pred_fallthru
      _
    %p224 = scmp.lt.s32.totalorder %s13, 2
    // Predicated region
    $region37: #{_lambda_.1} parent=5 // pred_check
      %p225 = pneg %p224
    $region38: #{_lambda_.1} parent=5 // pred_check_branch
      %227 = sbr.rel (%p225) target = $region40
    $region39: #{_lambda_.1} parent=5 // pred_region
      // Predicated region
      $region41: #{_lambda_.1} parent=39 // pred_check
        %p228 = pneg %p33
      $region42: #{_lambda_.1} parent=39 // pred_check_branch
        %230 = sbr.rel (%p228) target = $region44
      $region43: #{_lambda_.1} parent=39 // pred_region
        %p231 = scmp.lt.s32.totalorder %s13, 1
        %s232 = scalar_select %p231, %s13, 1
        %s233 = smul.addr %s232, 8
        %s234 = smul.addr %s233, 8
        %s235 = scalar_lea.vmem %s0, %s234
      $region44: #{_lambda_.1} parent=39 // pred_fallthru
        _
    $region40: #{_lambda_.1} parent=5 // pred_fallthru
      _
    %p236 = scmp.le.s32.totalorder 1, %s13
    %p237 = scmp.lt.s32.totalorder %s13, 3
    %p238 = pnand %p236, %p237
    %p239 = pneg %p238
    // Predicated region
    $region45: #{_lambda_.1} parent=5 // pred_check
      _
    $region46: #{_lambda_.1} parent=5 // pred_check_branch
      %241 = sbr.rel (%p238) target = $region48
    $region47: #{_lambda_.1} parent=5 // pred_region
      %s242 = ssub.s32 %s13, 1
      %p243 = scmp.lt.s32.totalorder %s18, 1
      %s244 = scalar_select %p243, %s18, 1
      %s245 = smul.addr %s244, 8
      %s246 = smul.addr %s245, 8
      %s247 = scalar_lea.vmem %s0, %s246
      %p248 = pneg %p39
      %p249 = pneg %p36
      %p250 = pneg %p60
      %p251 = pneg %p57
      %p252 = pneg %p81
      %p253 = pneg %p78
      %p254 = pneg %p102
      %p255 = pneg %p99
      %p256 = pneg %p123
      %p257 = pneg %p120
      %p258 = pneg %p144
      %p259 = pneg %p141
      %p260 = pneg %p165
      %p261 = pneg %p162
      %p262 = pneg %p191
      %p263 = pneg %p188
      %p264 = scmp.lt.s32.totalorder %s18, 1
      %s265 = scalar_select %p264, %s18, 1
      %s266 = smul.addr %s265, 8
      %s267 = smul.addr %s266, 8
      %s268 = scalar_lea.vmem %s7, %s267
      %p269 = scmp.lt.s32.totalorder %s18, 1
      %s270 = scalar_select %p269, %s18, 1
      %s271 = smul.addr %s270, 8
      %s272 = smul.addr %s271, 8
      %s273 = scalar_lea.vmem %s0, %s272
      %p274 = scmp.lt.s32.totalorder %s18, 1
      %s275 = scalar_select %p274, %s18, 1
      %s276 = smul.addr %s275, 8
      %s277 = smul.addr %s276, 8
      %s278 = scalar_lea.vmem %s7, %s277
      %v279 = vld [vmem:[%s273] sm:$0xff]
      %v280 = vld [vmem:[%s273 + $0x8] sm:$0xff]
      %v281 = vld [vmem:[%s273 + $0x10] sm:$0xff]
      %v282 = vld [vmem:[%s273 + $0x18] sm:$0xff]
      %v283 = vld [vmem:[%s273 + $0x20] sm:$0xff]
      %v284 = vld [vmem:[%s273 + $0x28] sm:$0xff]
      %v285 = vld [vmem:[%s273 + $0x30] sm:$0xff]
      %v286 = vld [vmem:[%s273 + $0x38] sm:$0xff]
      %v287 = vld [vmem:[%s1] sm:$0xff]
      %v288 = vld [vmem:[%s2] sm:$0xff]
      %290 = vset.pattern.permute.xlu0 0
      %291 = vperm.xlu0 %290, %v288
      %v292 = vpop.permute.xlu0 %291
      %vm294 = vcmask 261120
      %v296 = vsel %vm294, %v287, 0
      %298 = vmatprep.subr.mxu0 %v280
      %299 = vmatpush1.msra.mxu0 %v279
      %300 = vmatprep.subr.mxu0 %v282
      %301 = vmatpush1.msra.mxu0 %v281
      %302 = vmatprep.subr.mxu0 %v284
      %303 = vmatpush1.msra.mxu0 %v283
      %304 = vmatprep.subr.mxu0 %v286
      %305 = vmatpush1.msra.mxu0 %v285
      %306 = vmatprep.subr.mxu0 0.0
      %307 = vmatpush1.msra.mxu0 0.0
      %308 = vmatprep.subr.mxu0 0.0
      %309 = vmatpush1.msra.mxu0 0.0
      %310 = vmatprep.subr.mxu0 0.0
      %311 = vmatpush1.msra.mxu0 0.0
      %312 = vmatprep.subr.mxu0 0.0
      %313 = vmatpush1.msra.mxu0 0.0
      %314 = vmatprep.subr.mxu0 0.0
      %315 = vmatpush1.msra.mxu0 0.0
      %316 = vmatprep.subr.mxu0 0.0
      %317 = vmatpush1.msra.mxu0 0.0
      %318 = vmatprep.subr.mxu0 0.0
      %319 = vmatpush1.msra.mxu0 0.0
      %320 = vmatprep.subr.mxu0 0.0
      %321 = vmatpush1.msra.mxu0 0.0
      %322 = vmatprep.subr.mxu0 0.0
      %323 = vmatpush1.msra.mxu0 0.0
      %324 = vmatprep.subr.mxu0 0.0
      %325 = vmatpush1.msra.mxu0 0.0
      %326 = vmatprep.subr.mxu0 0.0
      %327 = vmatpush1.msra.mxu0 0.0
      %328 = vmatprep.subr.mxu0 0.0
      %329 = vmatpush1.msra.mxu0 0.0
      %330 = vmatprep.subr.mxu0 0.0
      %331 = vmatpush1.msra.mxu0 0.0
      %332 = vmatprep.subr.mxu0 0.0
      %333 = vmatpush1.msra.mxu0 0.0
      %334 = vmatprep.subr.mxu0 0.0
      %335 = vmatpush1.msra.mxu0 0.0
      %336 = vmatprep.subr.mxu0 0.0
      %337 = vmatpush1.msra.mxu0 0.0
      %338 = vmatprep.subr.mxu0 0.0
      %339 = vmatpush1.msra.mxu0 0.0
      %340 = vmatprep.subr.mxu0 0.0
      %341 = vmatpush1.msra.mxu0 0.0
      %342 = vmatprep.subr.mxu0 0.0
      %343 = vmatpush1.msra.mxu0 0.0
      %344 = vmatprep.subr.mxu0 0.0
      %345 = vmatpush1.msra.mxu0 0.0
      %346 = vmatprep.subr.mxu0 0.0
      %347 = vmatpush1.msra.mxu0 0.0
      %348 = vmatprep.subr.mxu0 0.0
      %349 = vmatpush1.msra.mxu0 0.0
      %350 = vmatprep.subr.mxu0 0.0
      %351 = vmatpush1.msra.mxu0 0.0
      %352 = vmatprep.subr.mxu0 0.0
      %353 = vmatpush1.msra.mxu0 0.0
      %354 = vmatprep.subr.mxu0 0.0
      %355 = vmatpush1.msra.mxu0 0.0
      %356 = vmatprep.subr.mxu0 0.0
      %357 = vmatpush1.msra.mxu0 0.0
      %358 = vmatprep.subr.mxu0 0.0
      %359 = vmatpush1.msra.mxu0 0.0
      %360 = vmatprep.subr.mxu0 0.0
      %361 = vmatpush1.msra.mxu0 0.0
      %362 = vmatprep.mubr.f32.mxu0 0.0
      %363 = vmatmul.mubr.f32.gmra.mrb[0].mxu0 %v296
      %v364 = vpop.f32.mrb[0].mxu0
      %v365 = vadd.f32 %v292, %v364
      %v366 = vpop.f32.mrb[0].mxu0
      %v367 = vadd.f32 %v292, %v366
      %368 = vdwg.mxu0
      %v369 = vmax.f32 %v365, 0.0
      %v370 = vmax.f32 %v367, 0.0
      %s371 = scalar_lea.vmem %s3, 64
      %v372 = vld [vmem:[%s371] sm:$0xff]
      %v373 = vld [vmem:[%s371 + $0x8] sm:$0xff]
      %v374 = vmul.f32 %v369, %v372
      %v375 = vmul.f32 %v370, %v373
      %376 = vrot.lane.b32.xlu0 %v369, 17
      %v377 = vpop.permute.xlu0 %376
      %378 = vrot.lane.b32.xlu0 %v370, 17
      %v379 = vpop.permute.xlu0 %378
      %v380 = vlaneseq
      %v381 = vand.u32 %v380, 127
      %vm382 = vcmp.lt.s32.totalorder %v381, 17
      %v383 = vsel %vm382, %v377, %v379
      %v384 = vsel %vm382, %v379, %v377
      %v385 = vld [vmem:[%s3] sm:$0xff]
      %v386 = vld [vmem:[%s3 + $0x8] sm:$0xff]
      %v387 = vmul.f32 %v384, %v385
      %v388 = vmul.f32 %v383, %v386
      %v389 = vadd.f32 %v374, %v387
      %v390 = vadd.f32 %v375, %v388
      %391 = vrot.lane.b32.xlu0 %v369, 16
      %v392 = vpop.permute.xlu0 %391
      %393 = vrot.lane.b32.xlu0 %v370, 16
      %v394 = vpop.permute.xlu0 %393
      %vm395 = vcmp.lt.s32.totalorder %v381, 16
      %v396 = vsel %vm395, %v392, %v394
      %v397 = vsel %vm395, %v394, %v392
      %s398 = scalar_lea.vmem %s3, 16
      %v399 = vld [vmem:[%s398] sm:$0xff]
      %v400 = vld [vmem:[%s398 + $0x8] sm:$0xff]
      %v401 = vmul.f32 %v397, %v399
      %v402 = vmul.f32 %v396, %v400
      %v403 = vadd.f32 %v389, %v401
      %v404 = vadd.f32 %v390, %v402
      %405 = vrot.lane.b32.xlu0 %v369, 15
      %v406 = vpop.permute.xlu0 %405
      %407 = vrot.lane.b32.xlu0 %v370, 15
      %v408 = vpop.permute.xlu0 %407
      %vm409 = vcmp.lt.s32.totalorder %v381, 15
      %v410 = vsel %vm409, %v406, %v408
      %v411 = vsel %vm409, %v408, %v406
      %s412 = scalar_lea.vmem %s3, 32
      %v413 = vld [vmem:[%s412] sm:$0xff]
      %v414 = vld [vmem:[%s412 + $0x8] sm:$0xff]
      %v415 = vmul.f32 %v411, %v413
      %v416 = vmul.f32 %v410, %v414
      %v417 = vadd.f32 %v403, %v415
      %v418 = vadd.f32 %v404, %v416
      %419 = vrot.lane.b32.xlu0 %v369, 1
      %v420 = vpop.permute.xlu0 %419
      %421 = vrot.lane.b32.xlu0 %v370, 1
      %v422 = vpop.permute.xlu0 %421
      %vm423 = vcmp.lt.s32.totalorder %v381, 1
      %v424 = vsel %vm423, %v420, %v422
      %v425 = vsel %vm423, %v422, %v420
      %s426 = scalar_lea.vmem %s3, 48
      %v427 = vld [vmem:[%s426] sm:$0xff]
      %v428 = vld [vmem:[%s426 + $0x8] sm:$0xff]
      %v429 = vmul.f32 %v425, %v427
      %v430 = vmul.f32 %v424, %v428
      %v431 = vadd.f32 %v417, %v429
      %v432 = vadd.f32 %v418, %v430
      %433 = vrot.lane.b32.xlu0 %v369, 127
      %v434 = vpop.permute.xlu0 %433
      %435 = vrot.lane.b32.xlu0 %v370, 127
      %v436 = vpop.permute.xlu0 %435
      %vm437 = vcmp.lt.s32.totalorder %v381, 127
      %v438 = vsel %vm437, %v434, %v436
      %v439 = vsel %vm437, %v436, %v434
      %s440 = scalar_lea.vmem %s3, 80
      %v441 = vld [vmem:[%s440] sm:$0xff]
      %v442 = vld [vmem:[%s440 + $0x8] sm:$0xff]
      %v443 = vmul.f32 %v438, %v441
      %v444 = vmul.f32 %v439, %v442
      %v445 = vadd.f32 %v431, %v443
      %v446 = vadd.f32 %v432, %v444
      %447 = vrot.lane.b32.xlu0 %v369, 113
      %v448 = vpop.permute.xlu0 %447
      %449 = vrot.lane.b32.xlu0 %v370, 113
      %v450 = vpop.permute.xlu0 %449
      %vm451 = vcmp.lt.s32.totalorder %v381, 113
      %v452 = vsel %vm451, %v448, %v450
      %v453 = vsel %vm451, %v450, %v448
      %s454 = scalar_lea.vmem %s3, 96
      %v455 = vld [vmem:[%s454] sm:$0xff]
      %v456 = vld [vmem:[%s454 + $0x8] sm:$0xff]
      %v457 = vmul.f32 %v452, %v455
      %v458 = vmul.f32 %v453, %v456
      %v459 = vadd.f32 %v445, %v457
      %v460 = vadd.f32 %v446, %v458
      %461 = vrot.lane.b32.xlu0 %v369, 112
      %v462 = vpop.permute.xlu0 %461
      %463 = vrot.lane.b32.xlu0 %v370, 112
      %v464 = vpop.permute.xlu0 %463
      %vm465 = vcmp.lt.s32.totalorder %v381, 112
      %v466 = vsel %vm465, %v462, %v464
      %v467 = vsel %vm465, %v464, %v462
      %s468 = scalar_lea.vmem %s3, 112
      %v469 = vld [vmem:[%s468] sm:$0xff]
      %v470 = vld [vmem:[%s468 + $0x8] sm:$0xff]
      %v471 = vmul.f32 %v466, %v469
      %v472 = vmul.f32 %v467, %v470
      %v473 = vadd.f32 %v459, %v471
      %v474 = vadd.f32 %v460, %v472
      %475 = vrot.lane.b32.xlu0 %v369, 111
      %v476 = vpop.permute.xlu0 %475
      %477 = vrot.lane.b32.xlu0 %v370, 111
      %v478 = vpop.permute.xlu0 %477
      %vm479 = vcmp.lt.s32.totalorder %v381, 111
      %v480 = vsel %vm479, %v476, %v478
      %v481 = vsel %vm479, %v478, %v476
      %s482 = scalar_lea.vmem %s3, 128
      %v483 = vld [vmem:[%s482] sm:$0xff]
      %v484 = vld [vmem:[%s482 + $0x8] sm:$0xff]
      %v485 = vmul.f32 %v480, %v483
      %v486 = vmul.f32 %v481, %v484
      %v487 = vadd.f32 %v473, %v485
      %v488 = vadd.f32 %v474, %v486
      %v489 = vld [vmem:[%s4] sm:$0xff]
      %491 = vset.pattern.permute.xlu0 0
      %492 = vperm.xlu0 %491, %v489
      %v493 = vpop.permute.xlu0 %492
      %v495 = vadd.f32 %v487, %v493
      %v496 = vadd.f32 %v488, %v493
      %v497 = vld [vmem:[%s5] sm:$0xff]
      %v498 = vld [vmem:[%s5 + $0x8] sm:$0xff]
      %v499 = vld [vmem:[%s5 + $0x10] sm:$0xff]
      %v500 = vld [vmem:[%s5 + $0x18] sm:$0xff]
      %v501 = vld [vmem:[%s6] sm:$0xff]
      %v502 = vld [vmem:[%s6 + $0x8] sm:$0xff]
      %v503 = vld [vmem:[%s6 + $0x10] sm:$0xff]
      %v504 = vld [vmem:[%s6 + $0x18] sm:$0xff]
      %506 = vset.pattern.permute.xlu0 0
      %507 = vperm.xlu0 %506, %v501
      %v508 = vpop.permute.xlu0 %507
      %511 = vset.pattern.permute.xlu0 0
      %512 = vperm.xlu0 %511, %v502
      %v513 = vpop.permute.xlu0 %512
      %516 = vset.pattern.permute.xlu0 0
      %517 = vperm.xlu0 %516, %v503
      %v518 = vpop.permute.xlu0 %517
      %521 = vset.pattern.permute.xlu0 0
      %522 = vperm.xlu0 %521, %v504
      %v523 = vpop.permute.xlu0 %522
      %vm525 = vcmask 64512
      %v527 = vsel %vm525, %v497, 0
      %v530 = vsel %vm525, %v498, 0
      %v533 = vsel %vm525, %v499, 0
      %v536 = vsel %vm525, %v500, 0
      %538 = vmatprep.subr.mxu0 %v496
      %539 = vmatpush1.msra.mxu0 %v495
      %540 = vmatprep.subr.mxu0 0.0
      %541 = vmatpush1.msra.mxu0 0.0
      %542 = vmatprep.subr.mxu0 0.0
      %543 = vmatpush1.msra.mxu0 0.0
      %544 = vmatprep.subr.mxu0 0.0
      %545 = vmatpush1.msra.mxu0 0.0
      %546 = vmatprep.subr.mxu0 0.0
      %547 = vmatpush1.msra.mxu0 0.0
      %548 = vmatprep.subr.mxu0 0.0
      %549 = vmatpush1.msra.mxu0 0.0
      %550 = vmatprep.subr.mxu0 0.0
      %551 = vmatpush1.msra.mxu0 0.0
      %552 = vmatprep.subr.mxu0 0.0
      %553 = vmatpush1.msra.mxu0 0.0
      %554 = vmatprep.subr.mxu0 0.0
      %555 = vmatpush1.msra.mxu0 0.0
      %556 = vmatprep.subr.mxu0 0.0
      %557 = vmatpush1.msra.mxu0 0.0
      %558 = vmatprep.subr.mxu0 0.0
      %559 = vmatpush1.msra.mxu0 0.0
      %560 = vmatprep.subr.mxu0 0.0
      %561 = vmatpush1.msra.mxu0 0.0
      %562 = vmatprep.subr.mxu0 0.0
      %563 = vmatpush1.msra.mxu0 0.0
      %564 = vmatprep.subr.mxu0 0.0
      %565 = vmatpush1.msra.mxu0 0.0
      %566 = vmatprep.subr.mxu0 0.0
      %567 = vmatpush1.msra.mxu0 0.0
      %568 = vmatprep.subr.mxu0 0.0
      %569 = vmatpush1.msra.mxu0 0.0
      %570 = vmatprep.subr.mxu0 0.0
      %571 = vmatpush1.msra.mxu0 0.0
      %572 = vmatprep.subr.mxu0 0.0
      %573 = vmatpush1.msra.mxu0 0.0
      %574 = vmatprep.subr.mxu0 0.0
      %575 = vmatpush1.msra.mxu0 0.0
      %576 = vmatprep.subr.mxu0 0.0
      %577 = vmatpush1.msra.mxu0 0.0
      %578 = vmatprep.subr.mxu0 0.0
      %579 = vmatpush1.msra.mxu0 0.0
      %580 = vmatprep.subr.mxu0 0.0
      %581 = vmatpush1.msra.mxu0 0.0
      %582 = vmatprep.subr.mxu0 0.0
      %583 = vmatpush1.msra.mxu0 0.0
      %584 = vmatprep.subr.mxu0 0.0
      %585 = vmatpush1.msra.mxu0 0.0
      %586 = vmatprep.subr.mxu0 0.0
      %587 = vmatpush1.msra.mxu0 0.0
      %588 = vmatprep.subr.mxu0 0.0
      %589 = vmatpush1.msra.mxu0 0.0
      %590 = vmatprep.subr.mxu0 0.0
      %591 = vmatpush1.msra.mxu0 0.0
      %592 = vmatprep.subr.mxu0 0.0
      %593 = vmatpush1.msra.mxu0 0.0
      %594 = vmatprep.subr.mxu0 0.0
      %595 = vmatpush1.msra.mxu0 0.0
      %596 = vmatprep.subr.mxu0 0.0
      %597 = vmatpush1.msra.mxu0 0.0
      %598 = vmatprep.subr.mxu0 0.0
      %599 = vmatpush1.msra.mxu0 0.0
      %600 = vmatprep.subr.mxu0 0.0
      %601 = vmatpush1.msra.mxu0 0.0
      %602 = vmatprep.mubr.f32.mxu0 0.0
      %603 = vmatmul.mubr.f32.gmra.mrb[0].mxu0 %v527
      %v604 = vpop.f32.mrb[0].mxu0
      %v605 = vadd.f32 %v508, %v604
      %v606 = vpop.f32.mrb[0].mxu0
      %v607 = vadd.f32 %v508, %v606
      %608 = vmatprep.mubr.f32.mxu0 0.0
      %609 = vmatmul.mubr.f32.gmra.mrb[0].mxu0 %v530
      %v610 = vpop.f32.mrb[0].mxu0
      %v611 = vadd.f32 %v513, %v610
      %v612 = vpop.f32.mrb[0].mxu0
      %v613 = vadd.f32 %v513, %v612
      %614 = vmatprep.mubr.f32.mxu0 0.0
      %615 = vmatmul.mubr.f32.gmra.mrb[0].mxu0 %v533
      %v616 = vpop.f32.mrb[0].mxu0
      %v617 = vadd.f32 %v518, %v616
      %v618 = vpop.f32.mrb[0].mxu0
      %v619 = vadd.f32 %v518, %v618
      %620 = vmatprep.mubr.f32.mxu0 0.0
      %621 = vmatmul.mubr.f32.gmra.mrb[0].mxu0 %v536
      %v622 = vpop.f32.mrb[0].mxu0
      %v623 = vadd.f32 %v523, %v622
      %v624 = vpop.f32.mrb[0].mxu0
      %v625 = vadd.f32 %v523, %v624
      %626 = vdwg.mxu0
      %v627 = vadd.f32 %v605, %v279
      %v628 = vadd.f32 %v607, %v280
      %v629 = vadd.f32 %v611, %v281
      %v630 = vadd.f32 %v613, %v282
      %v631 = vadd.f32 %v617, %v283
      %v632 = vadd.f32 %v619, %v284
      %v633 = vadd.f32 %v623, %v285
      %v634 = vadd.f32 %v625, %v286
      %v635 = vmax.f32 %v627, 0.0
      %v636 = vmax.f32 %v628, 0.0
      %v637 = vmax.f32 %v629, 0.0
      %v638 = vmax.f32 %v630, 0.0
      %v639 = vmax.f32 %v631, 0.0
      %v640 = vmax.f32 %v632, 0.0
      %v641 = vmax.f32 %v633, 0.0
      %v642 = vmax.f32 %v634, 0.0
      %643 = vst [vmem:[%s278] sm:$0xff] %v635
      %644 = vst [vmem:[%s278 + $0x8] sm:$0xff] %v636
      %645 = vst [vmem:[%s278 + $0x10] sm:$0xff] %v637
      %646 = vst [vmem:[%s278 + $0x18] sm:$0xff] %v638
      %647 = vst [vmem:[%s278 + $0x20] sm:$0xff] %v639
      %648 = vst [vmem:[%s278 + $0x28] sm:$0xff] %v640
      %649 = vst [vmem:[%s278 + $0x30] sm:$0xff] %v641
      %650 = vst [vmem:[%s278 + $0x38] sm:$0xff] %v642
      %p651 = scmp.lt.s32.totalorder %s18, 1
      %s652 = scalar_select %p651, %s18, 1
      %s653 = smul.addr %s652, 8
      %s654 = smul.addr %s653, 8
      %s655 = scalar_lea.vmem %s7, %s654
      // Predicated region
      $region49: #{_lambda_.1} parent=47 // pred_check
        %p656 = pneg %p188
      $region50: #{_lambda_.1} parent=47 // pred_check_branch
        %658 = sbr.rel (%p656) target = $region52
      $region51: #{_lambda_.1} parent=47 // pred_region
        _
      $region52: #{_lambda_.1} parent=47 // pred_fallthru
        _
    $region48: #{_lambda_.1} parent=5 // pred_fallthru
      _
    %p659 = scmp.le.s32.totalorder 2, %s13
    // Predicated region
    $region53: #{_lambda_.1} parent=5 // pred_check
      %p660 = pneg %p659
    $region54: #{_lambda_.1} parent=5 // pred_check_branch
      %662 = sbr.rel (%p660) target = $region56
    $region55: #{_lambda_.1} parent=5 // pred_region
      %s663 = ssub.s32 %s13, 2
      // Predicated region
      $region57: #{_lambda_.1} parent=55 // pred_check
        %p664 = pneg %p194
      $region58: #{_lambda_.1} parent=55 // pred_check_branch
        %666 = sbr.rel (%p664) target = $region60
      $region59: #{_lambda_.1} parent=55 // pred_region
        %p667 = scmp.lt.s32.totalorder %s19, 1
        %s668 = scalar_select %p667, %s19, 1
        %s669 = smul.addr %s668, 8
        %s670 = smul.addr %s669, 8
        %s671 = scalar_lea.vmem %s7, %s670
      $region60: #{_lambda_.1} parent=55 // pred_fallthru
        _
    $region56: #{_lambda_.1} parent=5 // pred_fallthru
      _
  $region6: #{_lambda_.1} parent=0 // loop_footer
    %s17 = sadd.s32 1, %s13
  $region7: #{_lambda_.1} parent=0 // loop_footer_branch
    %12 = sbr.rel target = $region3
  $region8: #{_lambda_.1} parent=0 // loop_exit
    _

</llo_original>
